<compile_context>
chip_gen: v6e
topology: v6e:2x2x1
jax: 0.10.0
libtpu: 0.0.40
codegen_flags: <defaults>
</compile_context>

<pallas_src>
import math

import jax
import jax.numpy as jnp
from jax.experimental import pallas as pl
from jax.experimental.pallas import tpu as pltpu


# ------------------------- kernels -------------------------

def _softplus(x):
    # numerically stable softplus: max(x,0) + log1p(exp(-|x|))
    return jnp.maximum(x, 0.0) + jnp.log1p(jnp.exp(-jnp.abs(x)))


def _encoder_kernel_fused(mu_ref, x_ref, w1mu_ref, w1x_ref, b1_ref,
                          w2t_ref, b2t_ref, out_ref):
    """hidden < 128: mean/var branches fused, block-diagonal layer-2 weights."""
    cdt = w1mu_ref.dtype                              # bf16 MXU operands
    # layer 1: f32 inputs cast to bf16 in-kernel (VPU slack), f32 accumulation.
    h = jnp.tanh(
        jnp.dot(mu_ref[...].astype(cdt), w1mu_ref[...],
                preferred_element_type=jnp.float32)
        + jnp.dot(x_ref[...].astype(cdt), w1x_ref[...],
                  preferred_element_type=jnp.float32)
        + b1_ref[...])
    # layer 2 directly in transposed orientation: contract both operands on
    # their last dim -> [2*dim_z, TB].  Batch lands on the lane axis, so the
    # output store is lane-dense (no 2*dim_z-lane masked vst).
    raw_t = jax.lax.dot_general(
        w2t_ref[...], h.astype(cdt), (((1,), (1,)), ((), ())),
        preferred_element_type=jnp.float32) + b2t_ref[...]
    dim_z = out_ref.shape[0] // 2
    row = jax.lax.broadcasted_iota(jnp.int32, raw_t.shape, 0)
    zvar = _softplus(raw_t) + jnp.float32(1e-6)       # strictly positive
    out_ref[...] = jnp.where(row >= dim_z, zvar, raw_t)


def _encoder_kernel_split(mu_ref, x_ref, w1mu_ref, w1x_ref, b1_ref,
                          w2mt_ref, w2vt_ref, b2mt_ref, b2vt_ref, out_ref):
    """hidden >= 128 (multiple of 128): lane-aligned split layer 2 (no zeros)."""
    cdt = w1mu_ref.dtype
    hidden = w2mt_ref.shape[1]
    dn = (((1,), (1,)), ((), ()))
    h = jnp.tanh(
        jnp.dot(mu_ref[...].astype(cdt), w1mu_ref[...],
                preferred_element_type=jnp.float32)
        + jnp.dot(x_ref[...].astype(cdt), w1x_ref[...],
                  preferred_element_type=jnp.float32)
        + b1_ref[...])
    hc = h.astype(cdt)
    # hidden is a multiple of 128 on this path -> lane slices of h are
    # vreg-aligned (free); outputs are [dim_z, TB] (lane-dense batch axis).
    mean_t = jax.lax.dot_general(w2mt_ref[...], hc[:, :hidden], dn,
                                 preferred_element_type=jnp.float32) + b2mt_ref[...]
    var_t = jax.lax.dot_general(w2vt_ref[...], hc[:, hidden:], dn,
                                preferred_element_type=jnp.float32) + b2vt_ref[...]
    var_t = _softplus(var_t) + jnp.float32(1e-6)
    out_ref[...] = jnp.concatenate([mean_t, var_t], axis=0)


# ------------------------- planning & packing -------------------------

def _plan_tiles(n_batch, dim_mu, dx, hidden, dim_z):
    """Batch tile sized honestly against VMEM: resident weights (single
    buffer), double-buffered f32 activation tiles and f32 intermediates."""
    resident = ((dim_mu + dx) * 2 * hidden * 2        # w1_mu + w1_x (bf16)
                + 2 * hidden * 4                      # b1 (f32)
                + 2 * dim_z * 2 * hidden * 2          # W2 (bf16, block-diag worst case)
                + 2 * dim_z * 4)                      # b2 (f32)
    per_row = (2 * (dim_mu + dx) * 4                  # f32 input tiles, double-buffered
               + 2 * (2 * dim_z) * 4                  # f32 output tile, double-buffered
               + 2 * hidden * (4 + 2)                 # h (f32) + bf16 copy for layer 2
               + 2 * (2 * dim_z) * 4)                 # layer-2 raw / softplus temps
    try:
        cap = int(pltpu.get_tpu_info().vmem_capacity_bytes)
    except Exception:
        cap = 64 << 20                                # conservative (v7x per-TC VMEM)
    vmem_limit = min((cap * 3) // 4, 96 << 20)        # ~96 MiB v5e/v6e, ~48 MiB v7x
    budget = max(vmem_limit - resident - (2 << 20), 1 << 20)
    tb = min(budget // max(per_row, 1), 2048)
    if n_batch > 128:
        # keep >= 2 grid steps: DMA/compute overlap, and both v7x TCs get work.
        half = (n_batch + 1) // 2
        tb = min(tb, ((half + 127) // 128) * 128)
    if tb >= n_batch or n_batch <= 128:
        tb = n_batch                                  # single full block on batch axis
    else:
        # multi-step grid: lane dim of the transposed output block must be a
        # multiple of 128; never exceed n_batch.
        tb = min(max(128, (tb // 128) * 128), n_batch)
    return int(tb), int(vmem_limit)


def prepare_params(params, dim_mu):
    """One-time packing/casting of the two MLP branches (hoisted out of the
    per-call hot path).  Returns the arrays consumed by the kernel."""
    cdt = jnp.bfloat16
    hidden = params["w1m"].shape[1]
    dim_z = params["w2m"].shape[1]
    # layer 1 fused to [Din, 2H], row-split into a mu-block and an x-block so
    # the forward never materializes concat(mu, x_flat).
    w1 = jnp.concatenate([params["w1m"], params["w1v"]], axis=1)
    packed = {
        "w1_mu": w1[:dim_mu, :].astype(cdt),                            # [dim_mu, 2H]
        "w1_x": w1[dim_mu:, :].astype(cdt),                             # [dx, 2H]
        "b1": jnp.concatenate([params["b1m"], params["b1v"]],
                              axis=1).astype(jnp.float32),              # [1, 2H]
    }
    if hidden >= 128 and hidden % 128 == 0:
        # lane-aligned split layer 2 (no block-diag zeros).
        packed["w2m_t"] = params["w2m"].T.astype(cdt)                   # [dim_z, H]
        packed["w2v_t"] = params["w2v"].T.astype(cdt)                   # [dim_z, H]
        packed["b2m_t"] = params["b2m"].reshape(-1, 1).astype(jnp.float32)
        packed["b2v_t"] = params["b2v"].reshape(-1, 1).astype(jnp.float32)
    else:
        # hidden < 128: MXU pads to 128 lanes anyway -> fused block-diag W2.
        w2 = jnp.zeros((2 * hidden, 2 * dim_z), jnp.float32)
        w2 = w2.at[:hidden, :dim_z].set(params["w2m"])
        w2 = w2.at[hidden:, dim_z:].set(params["w2v"])
        packed["w2_t"] = w2.T.astype(cdt)                               # [2*dim_z, 2H]
        packed["b2_t"] = jnp.concatenate(
            [params["b2m"], params["b2v"]], axis=1).reshape(-1, 1).astype(jnp.float32)
    return packed


# ------------------------- forward -------------------------

@jax.jit
def var_encoder_forward(mu, x_win, packed):
    """mu: [B, dim_mu] f32, x_win: [B, n_win, *shape_x] f32.
    Returns (z_mean [B, dim_z], z_var [B, dim_z])."""
    n_batch, dim_mu = mu.shape
    x_flat = x_win.reshape(n_batch, -1)               # nn.Flatten of the window
    dx = x_flat.shape[1]
    hidden2 = packed["w1_mu"].shape[1]                # 2H
    hidden = hidden2 // 2
    split_l2 = "w2m_t" in packed
    dim_z = packed["w2m_t"].shape[0] if split_l2 else packed["w2_t"].shape[0] // 2

    tb, vmem_limit = _plan_tiles(n_batch, dim_mu, dx, hidden, dim_z)
    grid = (pl.cdiv(n_batch, tb),)

    res = pl.Buffered(1)          # constant index_map -> single resident buffer
    in_specs = [
        pl.BlockSpec((tb, dim_mu), lambda i: (i, 0)),                   # mu tile (f32)
        pl.BlockSpec((tb, dx), lambda i: (i, 0)),                       # x tile (f32)
        pl.BlockSpec((dim_mu, hidden2), lambda i: (0, 0), pipeline_mode=res),
        pl.BlockSpec((dx, hidden2), lambda i: (0, 0), pipeline_mode=res),
        pl.BlockSpec((1, hidden2), lambda i: (0, 0), pipeline_mode=res),
    ]
    if split_l2:
        kernel = _encoder_kernel_split
        in_specs += [
            pl.BlockSpec((dim_z, hidden), lambda i: (0, 0), pipeline_mode=res),
            pl.BlockSpec((dim_z, hidden), lambda i: (0, 0), pipeline_mode=res),
            pl.BlockSpec((dim_z, 1), lambda i: (0, 0), pipeline_mode=res),
            pl.BlockSpec((dim_z, 1), lambda i: (0, 0), pipeline_mode=res),
        ]
        args = (mu, x_flat, packed["w1_mu"], packed["w1_x"], packed["b1"],
                packed["w2m_t"], packed["w2v_t"], packed["b2m_t"], packed["b2v_t"])
    else:
        kernel = _encoder_kernel_fused
        in_specs += [
            pl.BlockSpec((2 * dim_z, hidden2), lambda i: (0, 0), pipeline_mode=res),
            pl.BlockSpec((2 * dim_z, 1), lambda i: (0, 0), pipeline_mode=res),
        ]
        args = (mu, x_flat, packed["w1_mu"], packed["w1_x"], packed["b1"],
                packed["w2_t"], packed["b2_t"])

    wbytes = sum(int(a.size) * a.dtype.itemsize for a in args[2:])
    cost = pl.CostEstimate(
        flops=2 * n_batch * (dim_mu + dx) * hidden2
              + 2 * n_batch * hidden2 * (2 * dim_z),
        transcendentals=n_batch * (hidden2 + 2 * dim_z),
        bytes_accessed=(int(mu.size) + int(x_flat.size)) * 4 + wbytes
                       + n_batch * 2 * dim_z * 4,
    )

    out_t = pl.pallas_call(
        kernel,
        out_shape=jax.ShapeDtypeStruct((2 * dim_z, n_batch), jnp.float32),
        grid=grid,
        in_specs=in_specs,
        out_specs=pl.BlockSpec((2 * dim_z, tb), lambda i: (0, i)),
        compiler_params=pltpu.CompilerParams(
            dimension_semantics=("parallel",),
            vmem_limit_bytes=int(vmem_limit),
        ),
        cost_estimate=cost,
    )(*args)

    # kernel output is lane-dense (2*dim_z, B); split and transpose back in
    # plain JAX (B * 2*dim_z f32 -> negligible).
    return out_t[:dim_z, :].T, out_t[dim_z:, :].T


# ------------------------- self-test -------------------------

def init_params(key, dim_in, hidden, dim_z):
    ks = jax.random.split(key, 8)
    s1 = 1.0 / jnp.sqrt(jnp.float32(dim_in))
    s2 = 1.0 / jnp.sqrt(jnp.float32(hidden))
    return {
        "w1m": jax.random.normal(ks[0], (dim_in, hidden), jnp.float32) * s1,
        "b1m": jax.random.normal(ks[1], (1, hidden), jnp.float32) * 0.01,
        "w2m": jax.random.normal(ks[2], (hidden, dim_z), jnp.float32) * s2,
        "b2m": jax.random.normal(ks[3], (1, dim_z), jnp.float32) * 0.01,
        "w1v": jax.random.normal(ks[4], (dim_in, hidden), jnp.float32) * s1,
        "b1v": jax.random.normal(ks[5], (1, hidden), jnp.float32) * 0.01,
        "w2v": jax.random.normal(ks[6], (hidden, dim_z), jnp.float32) * s2,
        "b2v": jax.random.normal(ks[7], (1, dim_z), jnp.float32) * 0.01,
    }


def _run_case(n_batch, dim_mu, dim_z, n_win, shape_x, hidden, key):
    k_mu, k_x, k_p = jax.random.split(key, 3)
    dim_in = dim_mu + n_win * math.prod(shape_x)
    mu = jax.random.normal(k_mu, (n_batch, dim_mu), jnp.float32)
    x_win = jax.random.normal(k_x, (n_batch, n_win, *shape_x), jnp.float32)
    params = init_params(k_p, dim_in, hidden, dim_z)

    packed = prepare_params(params, dim_mu)           # one-time, off the hot path
    z_mean, z_var = var_encoder_forward(mu, x_win, packed)
    z_mean, z_var = jax.block_until_ready((z_mean, z_var))

    # reference in plain JAX, numerics-matched to the kernel
    # (bf16 MXU operands, f32 accumulation and f32 elementwise math)
    def mm(a, w):
        return jnp.dot(a.astype(jnp.bfloat16), w.astype(jnp.bfloat16),
                       preferred_element_type=jnp.float32)
    feat = jnp.concatenate([mu, x_win.reshape(n_batch, -1)], axis=-1)
    hm = jnp.tanh(mm(feat, params["w1m"]) + params["b1m"])
    ref_mean = mm(hm, params["w2m"]) + params["b2m"]
    hv = jnp.tanh(mm(feat, params["w1v"]) + params["b1v"])
    raw = mm(hv, params["w2v"]) + params["b2v"]
    ref_var = jnp.maximum(raw, 0.0) + jnp.log1p(jnp.exp(-jnp.abs(raw))) + 1e-6

    assert z_mean.shape == (n_batch, dim_z) and z_var.shape == (n_batch, dim_z)
    assert bool(jnp.all(jnp.isfinite(z_mean))) and bool(jnp.all(jnp.isfinite(z_var)))
    assert bool(jnp.all(z_var > 0)), "Encoder: Variance must be positive."
    assert jnp.allclose(z_mean, ref_mean, atol=2e-3, rtol=2e-3), (
        float(jnp.max(jnp.abs(z_mean - ref_mean))))
    assert jnp.allclose(z_var, ref_var, atol=2e-3, rtol=2e-3), (
        float(jnp.max(jnp.abs(z_var - ref_var))))


if __name__ == "__main__":
    key = jax.random.PRNGKey(0)
    k1, k2, k3 = jax.random.split(key, 3)
    # VarAutoencoderConfig(dim_mu=8, dim_x=16, dim_z=8, n_win=4, shape_x=(16,))
    # 1) spec config, fused layer-2 path (hidden < 128), single-block grid
    _run_case(n_batch=2, dim_mu=8, dim_z=8, n_win=4, shape_x=(16,), hidden=32, key=k1)
    # 2) lane-aligned split layer-2 path (hidden = 128)
    _run_case(n_batch=16, dim_mu=8, dim_z=8, n_win=4, shape_x=(16,), hidden=128, key=k2)
    # 3) multi-step pipelined grid (>= 2 steps, partial last block, lane-dense out)
    _run_case(n_batch=200, dim_mu=8, dim_z=8, n_win=4, shape_x=(16,), hidden=32, key=k3)
    # Note: the module's parameter-finiteness asserts / kl_divergence / sample()
    # are host-side utilities, not part of the forward kernel.
    print("KERNEL_OK")
</pallas_src>

<mosaic_0001>
module attributes {stable_mosaic.version = 11 : i64} {
  func.func @_encoder_kernel_fused(%arg0: i32, %arg1: memref<2x8xf32, #tpu.memory_space<vmem>>, %arg2: memref<2x64xf32, #tpu.memory_space<vmem>>, %arg3: memref<8x64xbf16, #tpu.memory_space<vmem>>, %arg4: memref<64x64xbf16, #tpu.memory_space<vmem>>, %arg5: memref<1x64xf32, #tpu.memory_space<vmem>>, %arg6: memref<16x64xbf16, #tpu.memory_space<vmem>>, %arg7: memref<16x1xf32, #tpu.memory_space<vmem>>, %arg8: memref<16x2xf32, #tpu.memory_space<vmem>>) attributes {dimension_semantics = [#tpu.dimension_semantics<parallel>], iteration_bounds = array<i64: 1>, scalar_prefetch = 0 : i64, scratch_operands = 0 : i64, tpu.core_type = #tpu.core_type<tc>, window_params = [{transform_indices = @transform_0, window_bounds = array<i64: 2, 8>}, {transform_indices = @transform_1, window_bounds = array<i64: 2, 64>}, {pipeline_mode = #tpu.pipeline_mode<synchronous>, transform_indices = @transform_2, window_bounds = array<i64: 8, 64>}, {pipeline_mode = #tpu.pipeline_mode<synchronous>, transform_indices = @transform_3, window_bounds = array<i64: 64, 64>}, {pipeline_mode = #tpu.pipeline_mode<synchronous>, transform_indices = @transform_4, window_bounds = array<i64: 1, 64>}, {pipeline_mode = #tpu.pipeline_mode<synchronous>, transform_indices = @transform_5, window_bounds = array<i64: 16, 64>}, {pipeline_mode = #tpu.pipeline_mode<synchronous>, transform_indices = @transform_6, window_bounds = array<i64: 16, 1>}, {transform_indices = @transform_7, window_bounds = array<i64: 16, 2>}]} {
    %c0 = arith.constant 0 : index
    %c0_0 = arith.constant 0 : index
    %0 = vector.load %arg1[%c0, %c0_0] : memref<2x8xf32, #tpu.memory_space<vmem>>, vector<2x8xf32>
    %1 = arith.truncf %0 : vector<2x8xf32> to vector<2x8xbf16>
    %c0_1 = arith.constant 0 : index
    %c0_2 = arith.constant 0 : index
    %2 = vector.load %arg3[%c0_1, %c0_2] : memref<8x64xbf16, #tpu.memory_space<vmem>>, vector<8x64xbf16>
    %cst = arith.constant dense<0.000000e+00> : vector<2x64xf32>
    %3 = tpu.matmul %1, %2, %cst {dimension_numbers = #tpu.dot_dimension_numbers<[1], [0], [0], [1], [0, 0, 1, 1], [], []>} : vector<2x8xbf16>, vector<8x64xbf16>, vector<2x64xf32> -> vector<2x64xf32>
    %c0_3 = arith.constant 0 : index
    %c0_4 = arith.constant 0 : index
    %4 = vector.load %arg2[%c0_3, %c0_4] : memref<2x64xf32, #tpu.memory_space<vmem>>, vector<2x64xf32>
    %5 = arith.truncf %4 : vector<2x64xf32> to vector<2x64xbf16>
    %c0_5 = arith.constant 0 : index
    %c0_6 = arith.constant 0 : index
    %6 = vector.load %arg4[%c0_5, %c0_6] : memref<64x64xbf16, #tpu.memory_space<vmem>>, vector<64x64xbf16>
    %cst_7 = arith.constant dense<0.000000e+00> : vector<2x64xf32>
    %7 = tpu.matmul %5, %6, %cst_7 {dimension_numbers = #tpu.dot_dimension_numbers<[1], [0], [0], [1], [0, 0, 1, 1], [], []>} : vector<2x64xbf16>, vector<64x64xbf16>, vector<2x64xf32> -> vector<2x64xf32>
    %8 = arith.addf %3, %7 : vector<2x64xf32>
    %c0_8 = arith.constant 0 : index
    %c0_9 = arith.constant 0 : index
    %9 = vector.load %arg5[%c0_8, %c0_9] : memref<1x64xf32, #tpu.memory_space<vmem>>, vector<1x64xf32>
    %10 = vector.broadcast %9 : vector<1x64xf32> to vector<2x64xf32>
    %11 = arith.addf %8, %10 : vector<2x64xf32>
    %12 = math.tanh %11 : vector<2x64xf32>
    %c0_10 = arith.constant 0 : index
    %c0_11 = arith.constant 0 : index
    %13 = vector.load %arg6[%c0_10, %c0_11] : memref<16x64xbf16, #tpu.memory_space<vmem>>, vector<16x64xbf16>
    %14 = arith.truncf %12 : vector<2x64xf32> to vector<2x64xbf16>
    %cst_12 = arith.constant dense<0.000000e+00> : vector<16x2xf32>
    %15 = tpu.matmul %13, %14, %cst_12 {dimension_numbers = #tpu.dot_dimension_numbers<[1], [1], [0], [0], [0, 0, 1, 0], [], []>} : vector<16x64xbf16>, vector<2x64xbf16>, vector<16x2xf32> -> vector<16x2xf32>
    %c0_13 = arith.constant 0 : index
    %c0_14 = arith.constant 0 : index
    %16 = vector.load %arg7[%c0_13, %c0_14] : memref<16x1xf32, #tpu.memory_space<vmem>>, vector<16x1xf32>
    %17 = vector.broadcast %16 : vector<16x1xf32> to vector<16x2xf32>
    %18 = arith.addf %15, %17 : vector<16x2xf32>
    %19 = tpu.iota {dimensions = array<i32: 0>} : vector<16x2xi32>
    %cst_15 = arith.constant 0.000000e+00 : f32
    %20 = vector.broadcast %cst_15 : f32 to vector<16x2xf32>
    %21 = arith.maximumf %18, %20 : vector<16x2xf32>
    %22 = math.absf %18 : vector<16x2xf32>
    %cst_16 = arith.constant 0.000000e+00 : f32
    %23 = vector.broadcast %cst_16 : f32 to vector<16x2xf32>
    %24 = arith.subf %23, %22 : vector<16x2xf32>
    %25 = math.exp %24 : vector<16x2xf32>
    %26 = math.log1p %25 : vector<16x2xf32>
    %27 = arith.addf %21, %26 : vector<16x2xf32>
    %cst_17 = arith.constant 9.99999997E-7 : f32
    %28 = vector.broadcast %cst_17 : f32 to vector<16x2xf32>
    %29 = arith.addf %27, %28 : vector<16x2xf32>
    %c8_i32 = arith.constant 8 : i32
    %30 = vector.broadcast %c8_i32 : i32 to vector<16x2xi32>
    %31 = arith.cmpi sge, %19, %30 : vector<16x2xi32>
    %32 = arith.select %31, %29, %18 : vector<16x2xi1>, vector<16x2xf32>
    %c0_18 = arith.constant 0 : index
    %c0_19 = arith.constant 0 : index
    %33 = vector.load %arg8[%c0_18, %c0_19] : memref<16x2xf32, #tpu.memory_space<vmem>>, vector<16x2xf32>
    tpu.vector_store %arg8[%c0_18, %c0_19], %32 {strides = array<i32>} : memref<16x2xf32, #tpu.memory_space<vmem>>, vector<16x2xf32>,
    return
  }
  func.func @transform_0(%arg0: i32) -> (i32, i32) {
    %c0_i32 = arith.constant 0 : i32
    %c0_i32_0 = arith.constant 0 : i32
    return %arg0, %c0_i32 : i32, i32
  }
  func.func @transform_1(%arg0: i32) -> (i32, i32) {
    %c0_i32 = arith.constant 0 : i32
    %c0_i32_0 = arith.constant 0 : i32
    return %arg0, %c0_i32 : i32, i32
  }
  func.func @transform_2(%arg0: i32) -> (i32, i32) {
    %c0_i32 = arith.constant 0 : i32
    %c0_i32_0 = arith.constant 0 : i32
    %c0_i32_1 = arith.constant 0 : i32
    return %c0_i32, %c0_i32_0 : i32, i32
  }
  func.func @transform_3(%arg0: i32) -> (i32, i32) {
    %c0_i32 = arith.constant 0 : i32
    %c0_i32_0 = arith.constant 0 : i32
    %c0_i32_1 = arith.constant 0 : i32
    return %c0_i32, %c0_i32_0 : i32, i32
  }
  func.func @transform_4(%arg0: i32) -> (i32, i32) {
    %c0_i32 = arith.constant 0 : i32
    %c0_i32_0 = arith.constant 0 : i32
    %c0_i32_1 = arith.constant 0 : i32
    return %c0_i32, %c0_i32_0 : i32, i32
  }
  func.func @transform_5(%arg0: i32) -> (i32, i32) {
    %c0_i32 = arith.constant 0 : i32
    %c0_i32_0 = arith.constant 0 : i32
    %c0_i32_1 = arith.constant 0 : i32
    return %c0_i32, %c0_i32_0 : i32, i32
  }
  func.func @transform_6(%arg0: i32) -> (i32, i32) {
    %c0_i32 = arith.constant 0 : i32
    %c0_i32_0 = arith.constant 0 : i32
    %c0_i32_1 = arith.constant 0 : i32
    return %c0_i32, %c0_i32_0 : i32, i32
  }
  func.func @transform_7(%arg0: i32) -> (i32, i32) {
    %c0_i32 = arith.constant 0 : i32
    %c0_i32_0 = arith.constant 0 : i32
    return %c0_i32, %arg0 : i32, i32
  }
}

</mosaic_0001>

<llo_original>
// kernel: var_encoder_forward.1
$region0: #{var_encoder_forward.1}
  #allocation0 [shape = 'u32[]', space=smem, size = 0x4, offset = 0x4, fixed_abs, tag = 'smem constant byte address 0x4 - core index']
  #allocation1 [shape = 'u32[144,128]{1,0:T(1,128)}', space=vmem, size = 0x12000, scoped, tag = 'internal scratch']
  %s0 = inlined_call_operand.hbm [shape: f32[2,8], index: 0, kind: input, shape index: {}]
  %s1 = inlined_call_operand.vmem [shape: f32[2,64], index: 1, kind: input, shape index: {}]
  %s2 = inlined_call_operand.vmem [shape: bf16[8,64], index: 2, kind: input, shape index: {}]
  %s3 = inlined_call_operand.vmem [shape: bf16[64,64], index: 3, kind: input, shape index: {}]
  %s4 = inlined_call_operand.hbm [shape: f32[1,64], index: 4, kind: input, shape index: {}]
  %s5 = inlined_call_operand.hbm [shape: bf16[16,64], index: 5, kind: input, shape index: {}]
  %s6 = inlined_call_operand.vmem [shape: f32[16,1], index: 6, kind: input, shape index: {}]
  %s7 = inlined_call_operand.vmem [shape: f32[16,2], index: 7, kind: output, shape index: {}]
  %s8 = sld [smem:[#allocation0]]
  $region50: #{var_encoder_forward.1} parent=0
    _
  %s10 = ssub.s32 1, %s8
  %s11 = scalar_select 0, %s10, %s8
  $region1: #{var_encoder_forward.1} parent=0
    #allocation2 [shape = 'u8[1024]{0}', space=vmem, size = 0x400, scoped, tag = 'input window, operand 0, single buffered']
    #allocation3 [shape = 's32[1]{0}', space=sflag, size = 0x4, scoped, tag = 'scoped memory for var_encoder_forward.1']
    #allocation4 [shape = 'u8[512]{0}', space=vmem, size = 0x400, scoped, tag = 'input window, operand 4, single buffered']
    #allocation5 [shape = 's32[1]{0}', space=sflag, size = 0x4, scoped, tag = 'scoped memory for var_encoder_forward.1']
    #allocation6 [shape = 'u8[4096]{0}', space=vmem, size = 0x1000, scoped, tag = 'input window, operand 5, single buffered']
    %12 = vsyncpa [#allocation3], 0
    %13 = vsyncpa [#allocation5], 0
    // Predicated region
    $region2: #{var_encoder_forward.1} parent=1 // pred_check
      _
    $region3: #{var_encoder_forward.1} parent=1 // pred_check_branch
      %15 = sbr.rel (0) target = $region5
    $region4: #{var_encoder_forward.1} parent=1 // pred_region
      %s17 = ssub.s32 32, 32
      %18 = vsyncadd [#allocation3], %s17
      %s20 = sshll.u32 [#allocation2], 4
      %s21 = int_to_ptr.vmem [resolvable:$true] %s20
      %23 = dma.hbm_to_vmem [thread:$0]  %s0, 32, %s21, [#allocation3]
    $region5: #{var_encoder_forward.1} parent=1 // pred_fallthru
      _
    // Predicated region
    $region6: #{var_encoder_forward.1} parent=1 // pred_check
      _
    $region7: #{var_encoder_forward.1} parent=1 // pred_check_branch
      %25 = sbr.rel (0) target = $region9
    $region8: #{var_encoder_forward.1} parent=1 // pred_region
      _
    $region9: #{var_encoder_forward.1} parent=1 // pred_fallthru
      _
    // Predicated region
    $region10: #{var_encoder_forward.1} parent=1 // pred_check
      _
    $region11: #{var_encoder_forward.1} parent=1 // pred_check_branch
      %27 = sbr.rel (0) target = $region13
    $region12: #{var_encoder_forward.1} parent=1 // pred_region
      _
    $region13: #{var_encoder_forward.1} parent=1 // pred_fallthru
      _
    // Predicated region
    $region14: #{var_encoder_forward.1} parent=1 // pred_check
      _
    $region15: #{var_encoder_forward.1} parent=1 // pred_check_branch
      %29 = sbr.rel (0) target = $region17
    $region16: #{var_encoder_forward.1} parent=1 // pred_region
      _
    $region17: #{var_encoder_forward.1} parent=1 // pred_fallthru
      _
    // Predicated region
    $region18: #{var_encoder_forward.1} parent=1 // pred_check
      _
    $region19: #{var_encoder_forward.1} parent=1 // pred_check_branch
      %31 = sbr.rel (0) target = $region21
    $region20: #{var_encoder_forward.1} parent=1 // pred_region
      %s33 = ssub.s32 16, 16
      %34 = vsyncadd [#allocation5], %s33
      %s36 = sshll.u32 [#allocation4], 4
      %s37 = int_to_ptr.vmem [resolvable:$true] %s36
      %39 = dma.hbm_to_vmem [thread:$0]  %s4, 16, %s37, [#allocation5]
    $region21: #{var_encoder_forward.1} parent=1 // pred_fallthru
      _
    // Predicated region
    $region22: #{var_encoder_forward.1} parent=1 // pred_check
      _
    $region23: #{var_encoder_forward.1} parent=1 // pred_check_branch
      %41 = sbr.rel (0) target = $region25
    $region24: #{var_encoder_forward.1} parent=1 // pred_region
      %s43 = ssub.s32 128, 128
      %44 = vsyncadd [#allocation5], %s43
      %s45 = sshll.u32 [#allocation6], 4
      %s46 = int_to_ptr.vmem [resolvable:$true] %s45
      %51 = dma.hbm_to_vmem [thread:$0]  %s5, 128, %s46, [#allocation5], 64, 64, 4
    $region25: #{var_encoder_forward.1} parent=1 // pred_fallthru
      _
    // Predicated region
    $region26: #{var_encoder_forward.1} parent=1 // pred_check
      _
    $region27: #{var_encoder_forward.1} parent=1 // pred_check_branch
      %53 = sbr.rel (0) target = $region29
    $region28: #{var_encoder_forward.1} parent=1 // pred_region
      _
    $region29: #{var_encoder_forward.1} parent=1 // pred_fallthru
      _
    // Predicated region
    $region30: #{var_encoder_forward.1} parent=1 // pred_check
      _
    $region31: #{var_encoder_forward.1} parent=1 // pred_check_branch
      %55 = sbr.rel (0) target = $region33
    $region32: #{var_encoder_forward.1} parent=1 // pred_region
      %56 = dma.done [#allocation3], 32
    $region33: #{var_encoder_forward.1} parent=1 // pred_fallthru
      _
    // Predicated region
    $region34: #{var_encoder_forward.1} parent=1 // pred_check
      _
    $region35: #{var_encoder_forward.1} parent=1 // pred_check_branch
      %58 = sbr.rel (0) target = $region37
    $region36: #{var_encoder_forward.1} parent=1 // pred_region
      %59 = dma.done [#allocation5], 16
    $region37: #{var_encoder_forward.1} parent=1 // pred_fallthru
      _
    // Predicated region
    $region38: #{var_encoder_forward.1} parent=1 // pred_check
      _
    $region39: #{var_encoder_forward.1} parent=1 // pred_check_branch
      %61 = sbr.rel (0) target = $region41
    $region40: #{var_encoder_forward.1} parent=1 // pred_region
      %62 = dma.done [#allocation5], 128
    $region41: #{var_encoder_forward.1} parent=1 // pred_fallthru
      _
    %v64 = vld [vmem:[#allocation2] sm:$0x3]
    %v65 = vpack.c.bf16 %v64, %v64
    %v66 = vld [vmem:[%s2] sm:$0xf]
    %v67 = vld [vmem:[%s1] sm:$0x3]
    %v68 = vpack.c.bf16 %v67, %v67
    %v69 = vld [vmem:[%s3] sm:$0xf]
    %v70 = vld [vmem:[%s3 + $0x4] sm:$0xf]
    %v71 = vld [vmem:[%s3 + $0x8] sm:$0xf]
    %v72 = vld [vmem:[%s3 + $0xc] sm:$0xf]
    %v73 = vld [vmem:[%s3 + $0x10] sm:$0xf]
    %v74 = vld [vmem:[%s3 + $0x14] sm:$0xf]
    %v75 = vld [vmem:[%s3 + $0x18] sm:$0xf]
    %v76 = vld [vmem:[%s3 + $0x1c] sm:$0xf]
    %v85 = vunpack.c.l.b16 %v69
    %v86 = vunpack.c.l.b16 %v70
    %v87 = vunpack.c.l.b16 %v71
    %v88 = vunpack.c.l.b16 %v72
    %v89 = vunpack.c.l.b16 %v73
    %v90 = vunpack.c.l.b16 %v74
    %v91 = vunpack.c.l.b16 %v75
    %v92 = vunpack.c.l.b16 %v76
    %v93 = vpack.c.b16 %v86, %v85
    %v94 = vpack.c.b16 %v88, %v87
    %v95 = vpack.c.b16 %v90, %v89
    %v96 = vpack.c.b16 %v92, %v91
    %vm101 = vcmask 523264
    %v103 = vsel %vm101, %v68, 0
    %105 = vmatprep.subr.bf16.mxu0 0
    %106 = vmatpush1.bf16.msra.mxu0 0
    %107 = vmatprep.subr.bf16.mxu0 0
    %108 = vmatpush1.bf16.msra.mxu0 0
    %109 = vmatprep.subr.bf16.mxu0 0
    %110 = vmatpush1.bf16.msra.mxu0 0
    %111 = vmatprep.subr.bf16.mxu0 0
    %112 = vmatpush1.bf16.msra.mxu0 0
    %113 = vmatprep.subr.bf16.mxu0 0
    %114 = vmatpush1.bf16.msra.mxu0 %v96
    %115 = vmatprep.subr.bf16.mxu0 0
    %116 = vmatpush1.bf16.msra.mxu0 %v95
    %117 = vmatprep.subr.bf16.mxu0 0
    %118 = vmatpush1.bf16.msra.mxu0 %v94
    %119 = vmatprep.subr.bf16.mxu0 0
    %120 = vmatpush1.bf16.msra.mxu0 %v93
    %121 = vmatprep.subr.bf16.mxu0 0
    %122 = vmatpush2.bf16.msra.mxu0 0
    %123 = vmatprep.subr.bf16.mxu0 0
    %124 = vmatpush2.bf16.msra.mxu0 0
    %125 = vmatprep.subr.bf16.mxu0 0
    %126 = vmatpush2.bf16.msra.mxu0 0
    %127 = vmatprep.subr.bf16.mxu0 0
    %128 = vmatpush2.bf16.msra.mxu0 0
    %129 = vmatprep.subr.bf16.mxu0 0
    %130 = vmatpush2.bf16.msra.mxu0 0
    %131 = vmatprep.subr.bf16.mxu0 0
    %132 = vmatpush2.bf16.msra.mxu0 0
    %133 = vmatprep.subr.bf16.mxu0 0
    %134 = vmatpush2.bf16.msra.mxu0 0
    %135 = vmatprep.subr.bf16.mxu0 0
    %136 = vmatpush2.bf16.msra.mxu0 0
    %137 = vmatprep.mubr.bf16.mxu0 0
    %138 = vmatmul.mubr.bf16.gmra.mxu0 %v103
    %v139 = vpop.f32.mrf.mxu0
    %v140 = vadd.f32 0.0, %v139
    %v141 = vpop.f32.mrf.mxu0
    %v142 = vpop.f32.mrf.mxu0
    %v143 = vpop.f32.mrf.mxu0
    %144 = vdwg.mxu0
    %vm145 = vcmask 64512
    %v147 = vsel %vm145, %v65, 0
    %vm149 = vcmask 1043456
    %v151 = vsel %vm149, %v66, 0
    %153 = vmatprep.subr.bf16.mxu0 0
    %154 = vmatpush1.bf16.msra.mxu0 0
    %155 = vmatprep.subr.bf16.mxu0 0
    %156 = vmatpush1.bf16.msra.mxu0 0
    %157 = vmatprep.subr.bf16.mxu0 0
    %158 = vmatpush1.bf16.msra.mxu0 0
    %159 = vmatprep.subr.bf16.mxu0 0
    %160 = vmatpush1.bf16.msra.mxu0 0
    %161 = vmatprep.subr.bf16.mxu0 0
    %162 = vmatpush1.bf16.msra.mxu0 0
    %163 = vmatprep.subr.bf16.mxu0 0
    %164 = vmatpush1.bf16.msra.mxu0 0
    %165 = vmatprep.subr.bf16.mxu0 0
    %166 = vmatpush1.bf16.msra.mxu0 0
    %167 = vmatprep.subr.bf16.mxu0 0
    %168 = vmatpush1.bf16.msra.mxu0 %v151
    %169 = vmatprep.subr.bf16.mxu0 0
    %170 = vmatpush2.bf16.msra.mxu0 0
    %171 = vmatprep.subr.bf16.mxu0 0
    %172 = vmatpush2.bf16.msra.mxu0 0
    %173 = vmatprep.subr.bf16.mxu0 0
    %174 = vmatpush2.bf16.msra.mxu0 0
    %175 = vmatprep.subr.bf16.mxu0 0
    %176 = vmatpush2.bf16.msra.mxu0 0
    %177 = vmatprep.subr.bf16.mxu0 0
    %178 = vmatpush2.bf16.msra.mxu0 0
    %179 = vmatprep.subr.bf16.mxu0 0
    %180 = vmatpush2.bf16.msra.mxu0 0
    %181 = vmatprep.subr.bf16.mxu0 0
    %182 = vmatpush2.bf16.msra.mxu0 0
    %183 = vmatprep.subr.bf16.mxu0 0
    %184 = vmatpush2.bf16.msra.mxu0 0
    %185 = vmatprep.mubr.bf16.mxu0 0
    %186 = vmatmul.mubr.bf16.gmra.mxu0 %v147
    %v187 = vpop.f32.mrf.mxu0
    %v188 = vadd.f32 %v140, %v187
    %v189 = vpop.f32.mrf.mxu0
    %v190 = vpop.f32.mrf.mxu0
    %v191 = vpop.f32.mrf.mxu0
    %192 = vdwg.mxu0
    %v193 = vld [vmem:[#allocation4] sm:$0x1]
    %v195 = vlaneseq
    %v196 = vshrl.u32 %v195, 7
    %v197 = vsub.s32 0, %v196
    %v198 = vrot.slane %v193, %v197
    %v200 = vadd.f32 %v188, %v198
    %v201 = vtanh.pop %v200
    %v202 = vld [vmem:[#allocation6] sm:$0xf]
    %v203 = vld [vmem:[#allocation6 + $0x4] sm:$0xf]
    %v204 = vpack.c.bf16 %v201, %v201
    %v205 = vld [vmem:[%s6] sm:$0xff]
    %v206 = vld [vmem:[%s6 + $0x8] sm:$0xff]
    %208 = vset.pattern.permute.xlu0 0
    %209 = vperm.xlu0 %208, %v205
    %v210 = vpop.permute.xlu0 %209
    %213 = vset.pattern.permute.xlu0 0
    %214 = vperm.xlu0 %213, %v206
    %v215 = vpop.permute.xlu0 %214
    %v219 = vunpack.c.l.b16 %v202
    %v220 = vunpack.c.l.b16 %v203
    %v221 = vpack.c.b16 %v220, %v219
    %v223 = vsel %vm101, %v221, 0
    %v226 = vsel %vm101, %v204, 0
    %228 = vmatprep.subr.bf16.mxu0 0
    %229 = vmatpush1.bf16.xpose.msra.mxu0 0
    %230 = vmatprep.subr.bf16.mxu0 0
    %231 = vmatpush1.bf16.xpose.msra.mxu0 0
    %232 = vmatprep.subr.bf16.mxu0 0
    %233 = vmatpush1.bf16.xpose.msra.mxu0 0
    %234 = vmatprep.subr.bf16.mxu0 0
    %235 = vmatpush1.bf16.xpose.msra.mxu0 0
    %236 = vmatprep.subr.bf16.mxu0 0
    %237 = vmatpush1.bf16.xpose.msra.mxu0 0
    %238 = vmatprep.subr.bf16.mxu0 0
    %239 = vmatpush1.bf16.xpose.msra.mxu0 0
    %240 = vmatprep.subr.bf16.mxu0 0
    %241 = vmatpush1.bf16.xpose.msra.mxu0 0
    %242 = vmatprep.subr.bf16.mxu0 0
    %243 = vmatpush1.bf16.xpose.msra.mxu0 %v226
    %244 = vmatprep.subr.bf16.mxu0 0
    %245 = vmatpush2.bf16.xpose.msra.mxu0 0
    %246 = vmatprep.subr.bf16.mxu0 0
    %247 = vmatpush2.bf16.xpose.msra.mxu0 0
    %248 = vmatprep.subr.bf16.mxu0 0
    %249 = vmatpush2.bf16.xpose.msra.mxu0 0
    %250 = vmatprep.subr.bf16.mxu0 0
    %251 = vmatpush2.bf16.xpose.msra.mxu0 0
    %252 = vmatprep.subr.bf16.mxu0 0
    %253 = vmatpush2.bf16.xpose.msra.mxu0 0
    %254 = vmatprep.subr.bf16.mxu0 0
    %255 = vmatpush2.bf16.xpose.msra.mxu0 0
    %256 = vmatprep.subr.bf16.mxu0 0
    %257 = vmatpush2.bf16.xpose.msra.mxu0 0
    %258 = vmatprep.subr.bf16.mxu0 0
    %259 = vmatpush2.bf16.xpose.msra.mxu0 0
    %260 = vmatprep.mubr.bf16.mxu0 0
    %261 = vmatmul.mubr.bf16.gmra.mxu0 %v223
    %v262 = vpop.f32.mrf.mxu0
    %v263 = vadd.f32 %v210, %v262
    %v264 = vpop.f32.mrf.mxu0
    %v265 = vpop.f32.mrf.mxu0
    %v266 = vadd.f32 %v215, %v265
    %v267 = vpop.f32.mrf.mxu0
    %268 = vdwg.mxu0
    %v269 = vlaneseq
    %v270 = vshrl.u32 %v269, 7
    %v271 = vadd.s32 %v270, 8
    %v272 = vmax.f32 %v263, 0.0
    %v273 = vmax.f32 %v266, 0.0
    %v274 = vand.u32 2147483647, %v263
    %v275 = vand.u32 2147483647, %v266
    %v276 = vsub.f32 0.0, %v274
    %v277 = vsub.f32 0.0, %v275
    %v278 = vmul.f32 %v276, 1.442695
    %v279 = vpow.pop %v278
    %v280 = vmul.f32 %v277, 1.442695
    %v281 = vpow.pop %v280
    %v282 = vadd.f32 %v279, 1.0
    %v283 = vlog2.pop %v282
    %v284 = vmul.f32 %v283, 0.6931472
    %v285 = vmul.f32 -0.5, %v279
    %v286 = vadd.f32 %v285, 1.0
    %v287 = vmul.f32 %v286, %v279
    %v288 = vand.u32 2147483647, %v279
    %vm289 = vcmp.lt.f32.partialorder %v288, 0.0004427343
    %v290 = vsel %vm289, %v287, %v284
    %v291 = vadd.f32 %v281, 1.0
    %v292 = vlog2.pop %v291
    %v293 = vmul.f32 %v292, 0.6931472
    %v294 = vmul.f32 -0.5, %v281
    %v295 = vadd.f32 %v294, 1.0
    %v296 = vmul.f32 %v295, %v281
    %v297 = vand.u32 2147483647, %v281
    %vm298 = vcmp.lt.f32.partialorder %v297, 0.0004427343
    %v299 = vsel %vm298, %v296, %v293
    %v300 = vadd.f32 %v272, %v290
    %v301 = vadd.f32 %v273, %v299
    %v302 = vadd.f32 %v300, 1e-06
    %v303 = vadd.f32 %v301, 1e-06
    %vm304 = vcmp.ge.s32.totalorder %v270, 8
    %vm305 = vcmp.ge.s32.totalorder %v271, 8
    %v306 = vsel %vm304, %v302, %v263
    %v307 = vsel %vm305, %v303, %v266
    %vm308 = vcmask 15360
    %309 = vst.msk [vmem:[%s7] sm:$0xff] %vm308, %v306
    %310 = vst.msk [vmem:[%s7 + $0x8] sm:$0xff] %vm308, %v307
    // Predicated region
    $region42: #{var_encoder_forward.1} parent=1 // pred_check
      _
    $region43: #{var_encoder_forward.1} parent=1 // pred_check_branch
      %312 = sbr.rel (0) target = $region45
    $region44: #{var_encoder_forward.1} parent=1 // pred_region
      _
    $region45: #{var_encoder_forward.1} parent=1 // pred_fallthru
      _
    // Predicated region
    $region46: #{var_encoder_forward.1} parent=1 // pred_check
      _
    $region47: #{var_encoder_forward.1} parent=1 // pred_check_branch
      %314 = sbr.rel (0) target = $region49
    $region48: #{var_encoder_forward.1} parent=1 // pred_region
      _
    $region49: #{var_encoder_forward.1} parent=1 // pred_fallthru
      _
    %315 = vsyncpa [#allocation3], 1
    %316 = vsyncpa [#allocation5], 1

</llo_original>
